<compile_context>
chip_gen: v5e
topology: v5e:2x2
jax: 0.10.0
libtpu: 0.0.40
codegen_flags: <defaults>
</compile_context>

<pallas_src>
import functools

import numpy as np
import jax
import jax.numpy as jnp
from jax.experimental import pallas as pl
from jax.experimental.pallas import tpu as pltpu
from scipy.optimize import linear_sum_assignment


# ----------------------------- Pallas kernel ------------------------------- #

def _cost_kernel(out_ref, tgt_ref, cost_ref, *, num_classes, pos_dims,
                 cost_class_w, cost_bbox_w, max_distance, mxu_bf16):
    # out_ref:  (Bt, C+P, Qp) f32  feature-major query block (class logits ++ positions)
    # tgt_ref:  (Bt, Nt, 1+P) f32  (class id ++ target positions)
    # cost_ref: (Bt, Nt, Qp)  f32  targets-major cost tile (already "transposed")
    C, P = num_classes, pos_dims
    x = out_ref[...]
    t = tgt_ref[...]

    logits = x[:, :C, :]                          # (Bt, C, Qp)  sublane-aligned slice
    opos = x[:, C:C + P, :]                       # (Bt, P, Qp)
    # float -> int truncation matches torch .long() for non-negative integral ids.
    tcls = t[:, :, 0:1].astype(jnp.int32)         # (Bt, Nt, 1)
    tpos = t[:, :, 1:1 + P]                       # (Bt, Nt, P)

    # ---- softmax over the class (sublane) axis; normalization on the EUP slot ------
    m = jnp.max(logits, axis=1, keepdims=True)
    e = jnp.exp(logits - m)
    prob = e * pl.reciprocal(jnp.sum(e, axis=1, keepdims=True), approx=True)  # (Bt,C,Qp)

    # ---- class cost on the MXU: (-w_c * onehot(tgt)) @ prob -------------------------
    cids = jax.lax.broadcasted_iota(jnp.int32, (tcls.shape[0], tcls.shape[1], C), 2)
    onehot = jnp.where(cids == tcls, jnp.float32(-cost_class_w), jnp.float32(0.0))

    # ---- bbox cost: clamped Euclidean distance via the Gram form --------------------
    # d2[n, q] = ||w*t_n||^2 + ||w*o_q||^2 - 2 (w*t_n).(w*o_q)
    # The w_b weight is folded into the coordinates (exact under clamp/mask for
    # w_b >= 0); for (unusual) negative weights, post-scale like the reference.
    w_b = float(cost_bbox_w)
    if w_b >= 0.0:
        scale_in, scale_out = w_b, None
    else:
        scale_in, scale_out = 1.0, w_b
    tposw = tpos if scale_in == 1.0 else tpos * jnp.float32(scale_in)
    oposw = opos if scale_in == 1.0 else opos * jnp.float32(scale_in)
    cap = jnp.float32(scale_in * float(max_distance))

    tn = jnp.sum(tposw * tposw, axis=-1, keepdims=True)   # (Bt, Nt, 1)   lane reduce
    on = jnp.sum(oposw * oposw, axis=1, keepdims=True)    # (Bt, 1, Qp)   sublane reduce

    if mxu_bf16:
        oh_l, pr_r = onehot.astype(jnp.bfloat16), prob.astype(jnp.bfloat16)
        tp_l, op_r = tposw.astype(jnp.bfloat16), oposw.astype(jnp.bfloat16)
    else:
        oh_l, pr_r, tp_l, op_r = onehot, prob, tposw, oposw

    ccls = jnp.einsum('bnc,bcq->bnq', oh_l, pr_r,
                      preferred_element_type=jnp.float32)  # (Bt, Nt, Qp)
    dot = jnp.einsum('bnp,bpq->bnq', tp_l, op_r,
                     preferred_element_type=jnp.float32)   # (Bt, Nt, Qp)

    d2 = tn + on - jnp.float32(2.0) * dot
    dist = jnp.sqrt(jnp.maximum(d2, 0.0))
    dist = jnp.minimum(dist, cap)               # cost_bbox[cost_bbox > maxd] = maxd
    dist = jnp.where(tcls <= 0, cap, dist)      # cost_bbox[:, tgt_ids <= 0] = maxd
    if scale_out is not None:
        dist = dist * jnp.float32(scale_out)

    cost_ref[...] = dist + ccls


# ------------------------------ Host wrapper -------------------------------- #

def _round_up(x, m):
    return ((x + m - 1) // m) * m


def _vmem_per_batch_bytes(Qp, tile_n, n_feat_q, n_feat_t):
    """Per-batch-element VMEM (bytes) per grid step, counting padded layouts."""
    q_blk = 2 * _round_up(n_feat_q, 8) * Qp           # double-buffered query block
    t_blk = 2 * tile_n * _round_up(n_feat_t, 128)     # target block, 1+P lanes -> 128
    o_blk = 2 * tile_n * Qp                           # double-buffered output block
    temps = 4 * tile_n * Qp + 2 * _round_up(n_feat_q, 8) * Qp   # live (Nt,Qp) + prob/exp
    return 4 * (q_blk + t_blk + o_blk + temps)        # f32


def _pick_batch_block(B, Qp, tile_n, n_steps, n_feat_q, n_feat_t,
                      vmem_budget_bytes=12 << 20):
    """Batch elements per grid step: small enough to fit the (conservative, v5e-safe)
    VMEM budget, large enough to amortize per-step overhead, while keeping >=4 grid
    steps when shapes allow so DMA/compute pipelining (and both v7x TCs) stay fed."""
    per_b = _vmem_per_batch_bytes(Qp, tile_n, n_feat_q, n_feat_t)
    cap = max(1, vmem_budget_bytes // max(per_b, 1))
    target = B if n_steps >= 4 else max(1, B // 4)
    target = int(min(target, cap, B))
    for bt in range(max(target, 1), 0, -1):
        if B % bt == 0:
            return bt
    return 1


def hungarian_cost_matrix_padded(logits, out_pos, tgt_cls, tgt_pos, *,
                                 cost_class=1.0, cost_bbox=1.0, max_distance=100.0,
                                 batch_block=None, tile_n=512, mxu_bf16=False):
    """Returns the PADDED (B, Np, Qp) cost matrix (targets x queries) computed on TPU.

    Callers slice [:, :N, :Q]; do it on the host (numpy) since the matrix is headed to
    scipy anyway — a device-side slice would just re-copy the whole matrix in HBM.
    """
    B, Q, C = logits.shape
    _, N, P = tgt_pos.shape

    Qp = _round_up(max(Q, 128), 128)              # lane-dense output stores
    Np8 = _round_up(max(N, 8), 8)
    TILE_N = min(Np8, _round_up(tile_n, 8))       # bounds live (Nt, Qp) temporaries
    Np = _round_up(Np8, TILE_N)
    n_steps = Np // TILE_N

    f32 = jnp.float32
    # Distance is translation-invariant: subtracting one shared per-batch center keeps
    # the Gram-matrix cdist from losing f32 bits at large coordinate magnitudes.
    center = jnp.mean(tgt_pos.astype(f32), axis=1, keepdims=True)          # (B, 1, P)
    out_pos_c = out_pos.astype(f32) - center
    tgt_pos_c = tgt_pos.astype(f32) - center

    # Feature-major query packing: (B, C+P, Qp).
    out_packed = jnp.concatenate(
        [jnp.swapaxes(logits.astype(f32), 1, 2),        # (B, C, Q)
         jnp.swapaxes(out_pos_c, 1, 2)], axis=1)        # (B, P, Q)
    out_packed = jnp.pad(out_packed, ((0, 0), (0, 0), (0, Qp - Q)))        # (B, C+P, Qp)

    tgt_packed = jnp.concatenate([tgt_cls.astype(f32)[..., None], tgt_pos_c], axis=-1)
    tgt_packed = jnp.pad(tgt_packed, ((0, 0), (0, Np - N), (0, 0)))        # (B, Np, 1+P)

    if batch_block is None:
        batch_block = _pick_batch_block(B, Qp, TILE_N, n_steps, C + P, 1 + P)
    elif B % batch_block != 0:
        raise ValueError(f"batch_block={batch_block} must divide batch size {B}")
    grid = (B // batch_block, n_steps)

    kernel = functools.partial(
        _cost_kernel, num_classes=C, pos_dims=P,
        cost_class_w=float(cost_class), cost_bbox_w=float(cost_bbox),
        max_distance=float(max_distance), mxu_bf16=bool(mxu_bf16))

    return pl.pallas_call(
        kernel,
        out_shape=jax.ShapeDtypeStruct((B, Np, Qp), jnp.float32),
        grid=grid,
        in_specs=[
            # Query block index is invariant along the inner N axis -> stays resident.
            pl.BlockSpec((batch_block, C + P, Qp), lambda b, n: (b, 0, 0)),
            pl.BlockSpec((batch_block, TILE_N, 1 + P), lambda b, n: (b, n, 0)),
        ],
        out_specs=pl.BlockSpec((batch_block, TILE_N, Qp), lambda b, n: (b, n, 0)),
        compiler_params=pltpu.CompilerParams(
            dimension_semantics=("parallel", "parallel")),
    )(out_packed, tgt_packed)


# ------------------------------ Matcher glue -------------------------------- #

class HungarianMatcher:
    """JAX/Pallas port of the PyTorch HungarianMatcher forward pass."""

    def __init__(self, get_position_from_output, get_class_distribution_from_output,
                 get_position_from_target, get_class_from_target,
                 cost_class=1.0, cost_bbox=1.0, cost_giou=1.0, max_distance=100):
        assert cost_class != 0 or cost_bbox != 0 or cost_giou != 0, "all costs cant be 0"
        self.get_position_from_output = get_position_from_output
        self.get_class_distribution_from_output = get_class_distribution_from_output
        self.get_position_from_target = get_position_from_target
        self.get_class_from_target = get_class_from_target
        self.cost_class = cost_class
        self.cost_bbox = cost_bbox
        self.cost_giou = cost_giou          # unused by the reference forward as well
        self.max_distance = max_distance

    def __call__(self, outputs, targets):
        logits = self.get_class_distribution_from_output(outputs)   # [B, Q, C]
        out_pos = self.get_position_from_output(outputs)            # [B, Q, P]
        tgt_cls = self.get_class_from_target(targets)               # [B, N] (float ids)
        tgt_pos = self.get_position_from_target(targets)            # [B, N, P]
        Q, N = out_pos.shape[1], tgt_pos.shape[1]

        cost_padded = hungarian_cost_matrix_padded(
            logits, out_pos, tgt_cls, tgt_pos,
            cost_class=self.cost_class, cost_bbox=self.cost_bbox,
            max_distance=self.max_distance)                          # [B, Np, Qp]
        cost_np = np.asarray(jax.block_until_ready(cost_padded))[:, :N, :Q]

        # TODO(synk): linear_sum_assignment (Hungarian algorithm) is a sequential,
        # data-dependent combinatorial step with no clean Pallas equivalent; it runs
        # on the host (scipy), matching the reference's .cpu() + scipy behaviour.
        per_batch = [np.stack(linear_sum_assignment(cost_np[b]), axis=0)   # [2, L]
                     for b in range(cost_np.shape[0])]
        indices = np.stack(per_batch, axis=0).transpose(1, 0, 2)           # [2, B, L]
        return jnp.asarray(indices)


# ------------------------------ Reference (numpy) --------------------------- #

def _ref_cost(logits, opos, tcls, tpos, wc, wb, maxd):
    B = logits.shape[0]
    out = []
    for b in range(B):
        l = logits[b]
        p = np.exp(l - l.max(-1, keepdims=True))
        p = p / p.sum(-1, keepdims=True)
        ids = tcls[b].astype(np.int64)
        cc = -p[:, ids]                                                   # [Q, N]
        d = np.sqrt(((opos[b][:, None, :] - tpos[b][None, :, :]) ** 2).sum(-1))
        d = np.minimum(d, maxd)
        d[:, ids <= 0] = maxd
        out.append(wb * d.T + wc * cc.T)
    return np.stack(out)


# ---------------------------------- main ------------------------------------ #

if __name__ == "__main__":
    MAX_DIST = 100.0

    def check_cost(B, Q, C, P, T1, T2, key):
        N = T1 * T2
        k1, k2, k3, k4 = jax.random.split(key, 4)
        out_logits = jax.random.normal(k1, (B, Q, C), dtype=jnp.float32)
        out_positions = jax.random.uniform(k2, (B, Q, P), dtype=jnp.float32) * 200.0
        tgt_ids = jax.random.randint(k3, (B, T1, T2, 1), 0, C).astype(jnp.float32)
        tgt_positions = jax.random.uniform(k4, (B, T1, T2, P), dtype=jnp.float32) * 200.0
        targets = jnp.concatenate([tgt_ids, tgt_positions], axis=-1)      # [B, T1, T2, 1+P]
        tgt_cls = targets[..., 0].reshape(B, -1)
        tgt_pos = targets[..., 1:].reshape(B, -1, P)

        cost_pad = hungarian_cost_matrix_padded(
            out_logits, out_positions, tgt_cls, tgt_pos,
            cost_class=1.0, cost_bbox=1.0, max_distance=MAX_DIST)
        cost_tpu = np.asarray(jax.block_until_ready(cost_pad))[:, :N, :Q]
        cost_ref = _ref_cost(np.asarray(out_logits), np.asarray(out_positions),
                             np.asarray(tgt_cls), np.asarray(tgt_pos),
                             wc=1.0, wb=1.0, maxd=MAX_DIST)
        # Gram-form cdist (now centered) + approx reciprocal in softmax: small f32
        # deviations from the direct difference form remain, so keep a loose atol.
        np.testing.assert_allclose(cost_tpu, cost_ref, rtol=1e-4, atol=5e-2)
        return out_logits, out_positions, targets

    key = jax.random.PRNGKey(0)
    k0, k1 = jax.random.split(key)

    # Config 1 (also used for the full matcher forward): B=2, Q=16, C=8, P=4, N=8.
    B, Q, C, P, T1, T2 = 2, 16, 8, 4, 2, 4
    out_logits, out_positions, targets = check_cost(B, Q, C, P, T1, T2, k0)

    # Config 2: odd batch + target count that exercises sublane padding (N=12 -> 16).
    check_cost(3, 16, 8, 4, 3, 4, k1)

    # Full forward (cost matrix on TPU + host-side Hungarian assignment).
    outputs = jnp.concatenate([out_logits, out_positions], axis=-1)       # [B, Q, C+P]
    matcher = HungarianMatcher(
        get_position_from_output=lambda o: o[..., C:C + P],
        get_class_distribution_from_output=lambda o: o[..., :C],
        get_position_from_target=lambda t: t[..., 1:1 + P].reshape(t.shape[0], -1, P),
        get_class_from_target=lambda t: t[..., 0].reshape(t.shape[0], -1),
        cost_class=1.0, cost_bbox=1.0, cost_giou=1.0, max_distance=MAX_DIST)

    indices = matcher(outputs, targets)
    indices = jax.block_until_ready(indices)
    N = T1 * T2
    assert indices.shape == (2, B, min(N, Q)), indices.shape

    print("KERNEL_OK")
</pallas_src>

<mosaic_0001>
module attributes {stable_mosaic.version = 11 : i64} {
  func.func @_cost_kernel(%arg0: i32, %arg1: i32, %arg2: memref<1x12x128xf32, #tpu.memory_space<vmem>>, %arg3: memref<1x8x5xf32, #tpu.memory_space<vmem>>, %arg4: memref<1x8x128xf32, #tpu.memory_space<vmem>>) attributes {dimension_semantics = [#tpu.dimension_semantics<parallel>, #tpu.dimension_semantics<parallel>], iteration_bounds = array<i64: 2, 1>, scalar_prefetch = 0 : i64, scratch_operands = 0 : i64, tpu.core_type = #tpu.core_type<tc>, window_params = [{transform_indices = @transform_0, window_bounds = array<i64: 1, 12, 128>}, {transform_indices = @transform_1, window_bounds = array<i64: 1, 8, 5>}, {transform_indices = @transform_2, window_bounds = array<i64: 1, 8, 128>}]} {
    %c0 = arith.constant 0 : index
    %c0_0 = arith.constant 0 : index
    %c0_1 = arith.constant 0 : index
    %0 = vector.load %arg2[%c0, %c0_0, %c0_1] : memref<1x12x128xf32, #tpu.memory_space<vmem>>, vector<1x12x128xf32>
    %c0_2 = arith.constant 0 : index
    %c0_3 = arith.constant 0 : index
    %c0_4 = arith.constant 0 : index
    %1 = vector.load %arg3[%c0_2, %c0_3, %c0_4] : memref<1x8x5xf32, #tpu.memory_space<vmem>>, vector<1x8x5xf32>
    %2 = vector.extract_strided_slice %0 {offsets = [0, 0, 0], sizes = [1, 8, 128], strides = [1, 1, 1]} : vector<1x12x128xf32> to vector<1x8x128xf32>
    %3 = vector.extract_strided_slice %0 {offsets = [0, 8, 0], sizes = [1, 4, 128], strides = [1, 1, 1]} : vector<1x12x128xf32> to vector<1x4x128xf32>
    %4 = vector.extract_strided_slice %1 {offsets = [0, 0, 0], sizes = [1, 8, 1], strides = [1, 1, 1]} : vector<1x8x5xf32> to vector<1x8x1xf32>
    %5 = arith.fptosi %4 : vector<1x8x1xf32> to vector<1x8x1xi32>
    %6 = vector.extract_strided_slice %1 {offsets = [0, 0, 1], sizes = [1, 8, 4], strides = [1, 1, 1]} : vector<1x8x5xf32> to vector<1x8x4xf32>
    %cst = arith.constant dense<0xFF800000> : vector<1x128xf32>
    %7 = vector.multi_reduction <maximumf>, %2, %cst [1] : vector<1x8x128xf32> to vector<1x128xf32>
    %8 = vector.shape_cast %7 : vector<1x128xf32> to vector<1x1x128xf32>
    %9 = vector.broadcast %8 : vector<1x1x128xf32> to vector<1x8x128xf32>
    %10 = arith.subf %2, %9 : vector<1x8x128xf32>
    %11 = math.exp %10 : vector<1x8x128xf32>
    %cst_5 = arith.constant dense<0.000000e+00> : vector<1x128xf32>
    %12 = vector.multi_reduction <add>, %11, %cst_5 [1] : vector<1x8x128xf32> to vector<1x128xf32>
    %13 = vector.shape_cast %12 : vector<1x128xf32> to vector<1x1x128xf32>
    %14 = tpu.reciprocal %13 {approx = true} : vector<1x1x128xf32> -> vector<1x1x128xf32>
    %15 = vector.broadcast %14 : vector<1x1x128xf32> to vector<1x8x128xf32>
    %16 = arith.mulf %11, %15 : vector<1x8x128xf32>
    %17 = tpu.iota {dimensions = array<i32: 2>} : vector<1x8x8xi32>
    %18 = vector.broadcast %5 : vector<1x8x1xi32> to vector<1x8x8xi32>
    %19 = arith.cmpi eq, %17, %18 : vector<1x8x8xi32>
    %cst_6 = arith.constant -1.000000e+00 : f32
    %cst_7 = arith.constant 0.000000e+00 : f32
    %20 = vector.broadcast %cst_6 : f32 to vector<1x8x8xf32>
    %21 = vector.broadcast %cst_7 : f32 to vector<1x8x8xf32>
    %22 = arith.select %19, %20, %21 : vector<1x8x8xi1>, vector<1x8x8xf32>
    %23 = arith.mulf %6, %6 : vector<1x8x4xf32>
    %cst_8 = arith.constant dense<0.000000e+00> : vector<1x8xf32>
    %24 = vector.multi_reduction <add>, %23, %cst_8 [2] : vector<1x8x4xf32> to vector<1x8xf32>
    %25 = vector.shape_cast %24 : vector<1x8xf32> to vector<1x8x1xf32>
    %26 = arith.mulf %3, %3 : vector<1x4x128xf32>
    %cst_9 = arith.constant dense<0.000000e+00> : vector<1x128xf32>
    %27 = vector.multi_reduction <add>, %26, %cst_9 [1] : vector<1x4x128xf32> to vector<1x128xf32>
    %28 = vector.shape_cast %27 : vector<1x128xf32> to vector<1x1x128xf32>
    "tpu.trace_start"() <{level = 10 : i32, message = "bnc,bcq->bnq"}> : () -> ()
    %cst_10 = arith.constant dense<0.000000e+00> : vector<1x8x128xf32>
    %29 = tpu.matmul %22, %16, %cst_10 {dimension_numbers = #tpu.dot_dimension_numbers<[2], [1], [1], [2], [0, 0, 0, 1, 1, 2], [0], [0]>} : vector<1x8x8xf32>, vector<1x8x128xf32>, vector<1x8x128xf32> -> vector<1x8x128xf32>
    "tpu.trace_stop"() : () -> ()
    "tpu.trace_start"() <{level = 10 : i32, message = "bnp,bpq->bnq"}> : () -> ()
    %cst_11 = arith.constant dense<0.000000e+00> : vector<1x8x128xf32>
    %30 = tpu.matmul %6, %3, %cst_11 {dimension_numbers = #tpu.dot_dimension_numbers<[2], [1], [1], [2], [0, 0, 0, 1, 1, 2], [0], [0]>} : vector<1x8x4xf32>, vector<1x4x128xf32>, vector<1x8x128xf32> -> vector<1x8x128xf32>
    "tpu.trace_stop"() : () -> ()
    %31 = vector.broadcast %25 : vector<1x8x1xf32> to vector<1x8x128xf32>
    %32 = vector.broadcast %28 : vector<1x1x128xf32> to vector<1x8x128xf32>
    %33 = arith.addf %31, %32 : vector<1x8x128xf32>
    %cst_12 = arith.constant 2.000000e+00 : f32
    %34 = vector.broadcast %cst_12 : f32 to vector<1x8x128xf32>
    %35 = arith.mulf %34, %30 : vector<1x8x128xf32>
    %36 = arith.subf %33, %35 : vector<1x8x128xf32>
    %cst_13 = arith.constant 0.000000e+00 : f32
    %37 = vector.broadcast %cst_13 : f32 to vector<1x8x128xf32>
    %38 = arith.maximumf %36, %37 : vector<1x8x128xf32>
    %39 = math.sqrt %38 : vector<1x8x128xf32>
    %cst_14 = arith.constant 1.000000e+02 : f32
    %40 = vector.broadcast %cst_14 : f32 to vector<1x8x128xf32>
    %41 = arith.minimumf %39, %40 : vector<1x8x128xf32>
    %c0_i32 = arith.constant 0 : i32
    %42 = vector.broadcast %c0_i32 : i32 to vector<1x8x1xi32>
    %43 = arith.cmpi sle, %5, %42 : vector<1x8x1xi32>
    %cst_15 = arith.constant 1.000000e+02 : f32
    %44 = vector.shape_cast %43 : vector<1x8x1xi1> to vector<1x8x1xi1>
    %45 = vector.broadcast %44 : vector<1x8x1xi1> to vector<1x8x128xi1>
    %46 = vector.broadcast %cst_15 : f32 to vector<1x8x128xf32>
    %47 = arith.select %45, %46, %41 : vector<1x8x128xi1>, vector<1x8x128xf32>
    %48 = arith.addf %47, %29 : vector<1x8x128xf32>
    %c0_16 = arith.constant 0 : index
    %c0_17 = arith.constant 0 : index
    %c0_18 = arith.constant 0 : index
    %49 = vector.load %arg4[%c0_16, %c0_17, %c0_18] : memref<1x8x128xf32, #tpu.memory_space<vmem>>, vector<1x8x128xf32>
    tpu.vector_store %arg4[%c0_16, %c0_17, %c0_18], %48 {strides = array<i32>} : memref<1x8x128xf32, #tpu.memory_space<vmem>>, vector<1x8x128xf32>,
    return
  }
  func.func @transform_0(%arg0: i32, %arg1: i32) -> (i32, i32, i32) {
    %c0_i32 = arith.constant 0 : i32
    %c0_i32_0 = arith.constant 0 : i32
    %c0_i32_1 = arith.constant 0 : i32
    return %arg0, %c0_i32, %c0_i32_0 : i32, i32, i32
  }
  func.func @transform_1(%arg0: i32, %arg1: i32) -> (i32, i32, i32) {
    %c0_i32 = arith.constant 0 : i32
    %c0_i32_0 = arith.constant 0 : i32
    return %arg0, %arg1, %c0_i32 : i32, i32, i32
  }
  func.func @transform_2(%arg0: i32, %arg1: i32) -> (i32, i32, i32) {
    %c0_i32 = arith.constant 0 : i32
    %c0_i32_0 = arith.constant 0 : i32
    return %arg0, %arg1, %c0_i32 : i32, i32, i32
  }
}

</mosaic_0001>

<llo_original>
// kernel: tpu_custom_call.1
$region0: #{tpu_custom_call.1}
  #allocation0 [shape = 'u32[]', space=smem, size = 0x4, offset = 0x4, fixed_abs, tag = 'smem constant byte address 0x4 - core index']
  #allocation1 [shape = 'u32[72,128]{1,0:T(1,128)}', space=vmem, size = 0x9000, scoped, tag = 'internal scratch']
  %s0 = inlined_call_operand.vmem [shape: f32[2,12,128], index: 0, kind: input, shape index: {}]
  %s1 = inlined_call_operand.vmem [shape: f32[2,8,5], index: 1, kind: input, shape index: {}]
  %s2 = inlined_call_operand.hbm [shape: f32[2,8,128], index: 2, kind: output, shape index: {}]
  %s3 = sld [smem:[#allocation0]]
  $region41: #{tpu_custom_call.1} parent=0
    _
  %s5 = ssub.s32 1, %s3
  %s6 = scalar_select 0, %s5, %s3
  $region1: #{tpu_custom_call.1} parent=0
    #allocation2 [shape = 'u8[8192]{0}', space=vmem, size = 0x2000, scoped, tag = 'output window, operand 0']
    #allocation3 [shape = 's32[2]{0}', space=sflag, size = 0x8, scoped, tag = 'scoped memory for tpu_custom_call.1']
    %7 = vsyncpa [#allocation3], 0
    %s8 = scalar_lea.sflag [#allocation3], 1
    %9 = vsyncpa %s8, 0
    loop: start=0, step=1, limit=4
    $region2: #{tpu_custom_call.1} parent=1 // loop_pre_header
      _
    $region3: #{tpu_custom_call.1} parent=1 // loop_header
      %s11 = sphi 0, %s15
      %p12 = scmp.ge.s32.totalorder %s11, 4
      %s18 = sphi 0, %s30
      %s19 = sphi 0, %s26
      %s20 = sphi 0, %s18
      %s21 = sphi 0, %s19
      %s22 = sphi 0, %s20
      %s23 = sphi 0, %s21
      %s33 = sphi 0, %s35
      %s36 = sphi 0, %s33
      %s37 = sphi 0, %s36
      %s53 = sphi 0, %s37
      %s61 = sphi 0, %s63
      %s64 = sphi 0, %s61
      %s65 = sphi 0, %s64
      %s81 = sphi 0, %s65
      %s89 = sphi 0, %s91
      %s92 = sphi 0, %s89
      %s93 = sphi 0, %s92
      %s109 = sphi 0, %s93
    $region4: #{tpu_custom_call.1} parent=1 // loop_header_branch
      %14 = sbr.rel (%p12) target = $region8
    $region5: #{tpu_custom_call.1} parent=1 // loop_body
      %s16 = ssub.s32 %s11, 1
      %s17 = ssub.s32 %s11, 2
      %s24 = sadd.s32 1, %s19
      %p25 = scmp.ge.s32.totalorder %s24, 1
      %s26 = scalar_select %p25, 0, %s24
      %s27 = sadd.s32 1, %s18
      %s28 = scalar_select %p25, %s27, %s18
      %p29 = scmp.ge.s32.totalorder %s28, 2
      %s30 = scalar_select %p29, 0, %s28
      %s31 = ssub.s32 %s18, %s30
      %p32 = scmp.eq.s32.totalorder %s31, 0
      %s34 = sadd.s32 %s33, 1
      %s35 = scalar_select %p32, %s33, %s34
      %p38 = pneg %p32
      %p39 = scmp.eq.s32.totalorder %s11, 1
      %p40 = por %p38, %p39
      %p41 = scmp.ne.s32.totalorder %s33, %s36
      %p42 = scmp.eq.s32.totalorder %s11, 0
      %p43 = por %p41, %p42
      %p44 = scmp.ne.s32.totalorder %s33, %s36
      %p45 = scmp.eq.s32.totalorder %s16, 1
      %p46 = por %p44, %p45
      %p47 = scmp.ne.s32.totalorder %s36, %s37
      %p48 = scmp.eq.s32.totalorder %s16, 0
      %p49 = por %p47, %p48
      %p50 = scmp.ne.s32.totalorder %s36, %s37
      %p51 = scmp.eq.s32.totalorder %s17, 1
      %p52 = por %p50, %p51
      %p54 = scmp.ne.s32.totalorder %s37, %s53
      %p55 = scmp.eq.s32.totalorder %s17, 0
      %p56 = por %p54, %p55
      %s57 = ssub.s32 %s18, %s30
      %s58 = ssub.s32 %s19, %s26
      %s59 = sor.u32 %s57, %s58
      %p60 = scmp.eq.s32.totalorder %s59, 0
      %s62 = sadd.s32 %s61, 1
      %s63 = scalar_select %p60, %s61, %s62
      %p66 = pneg %p60
      %p67 = scmp.eq.s32.totalorder %s11, 1
      %p68 = por %p66, %p67
      %p69 = scmp.ne.s32.totalorder %s61, %s64
      %p70 = scmp.eq.s32.totalorder %s11, 0
      %p71 = por %p69, %p70
      %p72 = scmp.ne.s32.totalorder %s61, %s64
      %p73 = scmp.eq.s32.totalorder %s16, 1
      %p74 = por %p72, %p73
      %p75 = scmp.ne.s32.totalorder %s64, %s65
      %p76 = scmp.eq.s32.totalorder %s16, 0
      %p77 = por %p75, %p76
      %p78 = scmp.ne.s32.totalorder %s64, %s65
      %p79 = scmp.eq.s32.totalorder %s17, 1
      %p80 = por %p78, %p79
      %p82 = scmp.ne.s32.totalorder %s65, %s81
      %p83 = scmp.eq.s32.totalorder %s17, 0
      %p84 = por %p82, %p83
      %s85 = ssub.s32 %s18, %s30
      %s86 = ssub.s32 %s19, %s26
      %s87 = sor.u32 %s85, %s86
      %p88 = scmp.eq.s32.totalorder %s87, 0
      %s90 = sadd.s32 %s89, 1
      %s91 = scalar_select %p88, %s89, %s90
      %p94 = pneg %p88
      %p95 = scmp.eq.s32.totalorder %s11, 1
      %p96 = por %p94, %p95
      %p97 = scmp.ne.s32.totalorder %s89, %s92
      %p98 = scmp.eq.s32.totalorder %s11, 0
      %p99 = por %p97, %p98
      %p100 = scmp.ne.s32.totalorder %s89, %s92
      %p101 = scmp.eq.s32.totalorder %s16, 1
      %p102 = por %p100, %p101
      %p103 = scmp.ne.s32.totalorder %s92, %s93
      %p104 = scmp.eq.s32.totalorder %s16, 0
      %p105 = por %p103, %p104
      %p106 = scmp.ne.s32.totalorder %s92, %s93
      %p107 = scmp.eq.s32.totalorder %s17, 1
      %p108 = por %p106, %p107
      %p110 = scmp.ne.s32.totalorder %s93, %s109
      %p111 = scmp.eq.s32.totalorder %s17, 0
      %p112 = por %p110, %p111
      %p113 = scmp.le.s32.totalorder 1, %s11
      %p114 = scmp.lt.s32.totalorder %s11, 3
      %p115 = pnand %p113, %p114
      %p116 = pneg %p115
      // Predicated region
      $region9: #{tpu_custom_call.1} parent=5 // pred_check
        _
      $region10: #{tpu_custom_call.1} parent=5 // pred_check_branch
        %118 = sbr.rel (%p115) target = $region12
      $region11: #{tpu_custom_call.1} parent=5 // pred_region
        %s119 = ssub.s32 %s11, 1
      $region12: #{tpu_custom_call.1} parent=5 // pred_fallthru
        _
      %p120 = scmp.lt.s32.totalorder %s11, 2
      // Predicated region
      $region13: #{tpu_custom_call.1} parent=5 // pred_check
        %p121 = pneg %p120
      $region14: #{tpu_custom_call.1} parent=5 // pred_check_branch
        %123 = sbr.rel (%p121) target = $region16
      $region15: #{tpu_custom_call.1} parent=5 // pred_region
        // Predicated region
        $region17: #{tpu_custom_call.1} parent=15 // pred_check
          %p124 = pneg %p43
        $region18: #{tpu_custom_call.1} parent=15 // pred_check_branch
          %126 = sbr.rel (%p124) target = $region20
        $region19: #{tpu_custom_call.1} parent=15 // pred_region
          %p127 = scmp.lt.s32.totalorder %s18, 1
          %s128 = scalar_select %p127, %s18, 1
          %s129 = smul.addr %s128, 2
          %s130 = smul.addr %s129, 8
          %s131 = scalar_lea.vmem %s0, %s130
        $region20: #{tpu_custom_call.1} parent=15 // pred_fallthru
          _
        // Predicated region
        $region21: #{tpu_custom_call.1} parent=15 // pred_check
          %p132 = pneg %p71
        $region22: #{tpu_custom_call.1} parent=15 // pred_check_branch
          %134 = sbr.rel (%p132) target = $region24
        $region23: #{tpu_custom_call.1} parent=15 // pred_region
          %p135 = scmp.lt.s32.totalorder %s18, 1
          %s136 = scalar_select %p135, %s18, 1
          %p137 = scmp.lt.s32.totalorder %s19, 0
          %s138 = scalar_select %p137, %s19, 0
          %s139 = sadd.s32 %s138, %s136
          %s140 = smul.addr %s139, 8
          %s141 = scalar_lea.vmem %s1, %s140
        $region24: #{tpu_custom_call.1} parent=15 // pred_fallthru
          _
      $region16: #{tpu_custom_call.1} parent=5 // pred_fallthru
        _
      %p142 = scmp.le.s32.totalorder 1, %s11
      %p143 = scmp.lt.s32.totalorder %s11, 3
      %p144 = pnand %p142, %p143
      %p145 = pneg %p144
      // Predicated region
      $region25: #{tpu_custom_call.1} parent=5 // pred_check
        _
      $region26: #{tpu_custom_call.1} parent=5 // pred_check_branch
        %147 = sbr.rel (%p144) target = $region28
      $region27: #{tpu_custom_call.1} parent=5 // pred_region
        %s148 = ssub.s32 %s11, 1
        %p149 = scmp.lt.s32.totalorder %s20, 1
        %s150 = scalar_select %p149, %s20, 1
        %s151 = smul.addr %s150, 2
        %s152 = smul.addr %s151, 8
        %s153 = scalar_lea.vmem %s0, %s152
        %p154 = pneg %p49
        %p155 = pneg %p46
        %p156 = scmp.lt.s32.totalorder %s20, 1
        %s157 = scalar_select %p156, %s20, 1
        %p158 = scmp.lt.s32.totalorder %s21, 0
        %s159 = scalar_select %p158, %s21, 0
        %s160 = sadd.s32 %s159, %s157
        %s161 = smul.addr %s160, 8
        %s162 = scalar_lea.vmem %s1, %s161
        %p163 = pneg %p77
        %p164 = pneg %p74
        %p165 = pneg %p105
        %p166 = pneg %p102
        %s167 = sand.u32 %s92, 1
        %s168 = scalar_lea.sflag [#allocation3], %s167
        %s169 = sand.u32 %s92, 1
        %s170 = smul.addr %s169, 8
        %s171 = scalar_lea.vmem [#allocation2], %s170
        %p172 = scmp.lt.s32.totalorder %s20, 1
        %s173 = scalar_select %p172, %s20, 1
        %s174 = smul.addr %s173, 2
        %s175 = smul.addr %s174, 8
        %s176 = scalar_lea.vmem %s0, %s175
        %p177 = scmp.lt.s32.totalorder %s20, 1
        %s178 = scalar_select %p177, %s20, 1
        %p179 = scmp.lt.s32.totalorder %s21, 0
        %s180 = scalar_select %p179, %s21, 0
        %s181 = sadd.s32 %s180, %s178
        %s182 = smul.addr %s181, 8
        %s183 = scalar_lea.vmem %s1, %s182
        %v184 = vld [vmem:[%s176] sm:$0xff]
        %v185 = vld [vmem:[%s176 + $0x8] sm:$0xf]
        %v186 = vld [vmem:[%s183] sm:$0xff]
        %v187 = vcvt.f32.s32.to.zero.pseudo %v186
        %v188 = vrot.slane %v184, 4
        %v189 = vmax.f32 %v184, %v188
        %v190 = vrot.slane %v189, 2
        %v191 = vmax.f32 %v189, %v190
        %v192 = vrot.slane %v191, 1
        %v193 = vmax.f32 %v191, %v192
        %v194 = vsub.f32 %v184, %v193
        %v195 = vmul.f32 %v194, 1.442695
        %v196 = vpow.pop %v195
        %v197 = vrot.slane %v196, 4
        %v198 = vadd.f32 %v196, %v197
        %v199 = vrot.slane %v198, 2
        %v200 = vadd.f32 %v198, %v199
        %v201 = vrot.slane %v200, 1
        %v202 = vadd.f32 %v200, %v201
        %v203 = vrcp.pop %v202
        %v204 = vmul.f32 %v196, %v203
        %v205 = vlaneseq
        %v206 = vand.u32 %v205, 127
        %207 = vset.pattern.permute.xlu0 0
        %208 = vperm.xlu0 %207, %v187
        %v209 = vpop.permute.xlu0 %208
        %vm210 = vcmp.eq.s32.totalorder %v206, %v209
        %v211 = vsel %vm210, -1.0, 0.0
        %v212 = vmul.f32 %v186, %v186
        %214 = vrot.lane.b32.xlu0 %v212, 127
        %v215 = vpop.permute.xlu0 %214
        %vm217 = vcmask 31744
        %v218 = vsel %vm217, %v215, 0.0
        %219 = vadd.xlane.f32.xlu0 %v218
        %v220 = vpop.xlane.xlu0 %219
        %v221 = vmul.f32 %v185, %v185
        %vm222 = vcmask 1043456
        %v223 = vsel %vm222, %v221, 0.0
        %v224 = vrot.slane %v223, 4
        %v225 = vadd.f32 %v223, %v224
        %v226 = vrot.slane %v225, 2
        %v227 = vadd.f32 %v225, %v226
        %v228 = vrot.slane %v227, 1
        %v229 = vadd.f32 %v227, %v228
        %vm230 = vcmask 64512
        %v232 = vsel %vm230, %v211, 0
        %234 = vmatpush.msra.mxu0 0.0
        %235 = vmatpush.msra.mxu0 0.0
        %236 = vmatpush.msra.mxu0 0.0
        %237 = vmatpush.msra.mxu0 0.0
        %238 = vmatpush.msra.mxu0 0.0
        %239 = vmatpush.msra.mxu0 0.0
        %240 = vmatpush.msra.mxu0 0.0
        %241 = vmatpush.msra.mxu0 0.0
        %242 = vmatpush.msra.mxu0 0.0
        %243 = vmatpush.msra.mxu0 0.0
        %244 = vmatpush.msra.mxu0 0.0
        %245 = vmatpush.msra.mxu0 0.0
        %246 = vmatpush.msra.mxu0 0.0
        %247 = vmatpush.msra.mxu0 0.0
        %248 = vmatpush.msra.mxu0 0.0
        %249 = vmatpush.msra.mxu0 %v204
        %250 = vmatmul.f32.gmra.mxu0 %v232
        %v251 = vpop.f32.mrf.mxu0
        %v252 = vadd.f32 0.0, %v251
        %253 = vdwg.mxu0
        %255 = vrot.lane.b32.xlu0 %v186, 127
        %v256 = vpop.permute.xlu0 %255
        %v257 = vsel %vm217, %v256, 0
        %v260 = vsel %vm222, %v185, 0
        %262 = vmatpush.msra.mxu0 0.0
        %263 = vmatpush.msra.mxu0 0.0
        %264 = vmatpush.msra.mxu0 0.0
        %265 = vmatpush.msra.mxu0 0.0
        %266 = vmatpush.msra.mxu0 0.0
        %267 = vmatpush.msra.mxu0 0.0
        %268 = vmatpush.msra.mxu0 0.0
        %269 = vmatpush.msra.mxu0 0.0
        %270 = vmatpush.msra.mxu0 0.0
        %271 = vmatpush.msra.mxu0 0.0
        %272 = vmatpush.msra.mxu0 0.0
        %273 = vmatpush.msra.mxu0 0.0
        %274 = vmatpush.msra.mxu0 0.0
        %275 = vmatpush.msra.mxu0 0.0
        %276 = vmatpush.msra.mxu0 0.0
        %277 = vmatpush.msra.mxu0 %v260
        %278 = vmatmul.f32.gmra.mxu0 %v257
        %v279 = vpop.f32.mrf.mxu0
        %v280 = vadd.f32 0.0, %v279
        %281 = vdwg.mxu0
        %v282 = vadd.f32 %v220, %v229
        %v283 = vmul.f32 %v280, 2.0
        %v284 = vsub.f32 %v282, %v283
        %v285 = vmax.f32 %v284, 0.0
        %v286 = vrsqrt.pop %v285
        %v287 = vmul.f32 %v286, %v285
        %v288 = vmul.f32 %v287, %v286
        %v289 = vmul.f32 0.5, %v288
        %v290 = vsub.f32 1.5, %v289
        %v291 = vmul.f32 %v286, %v290
        %v292 = vmul.f32 %v285, %v291
        %vm293 = vcmp.eq.f32.partialorder %v285, inf
        %v294 = vsel %vm293, %v285, %v292
        %vm295 = vcmp.eq.f32.partialorder %v285, 0.0
        %v296 = vand.u32 %v285, 2147483648
        %v297 = vsel %vm295, %v296, %v294
        %v298 = vmin.f32 %v297, 100.0
        %vm299 = vcmp.le.s32.totalorder %v187, 0
        %v300 = vsel %vm299, 1, 0
        %301 = vset.pattern.permute.xlu0 0
        %302 = vperm.xlu0 %301, %v300
        %v303 = vpop.permute.xlu0 %302
        %vm304 = vcmp.eq.s32.totalorder %v303, 1
        %v305 = vsel %vm304, 100.0, %v298
        %v306 = vadd.f32 %v305, %v252
        %307 = vst [vmem:[%s171] sm:$0xff] %v306
        %s308 = sand.u32 %s92, 1
        %s309 = scalar_lea.sflag [#allocation3], %s308
        %s310 = sand.u32 %s92, 1
        %s311 = smul.addr %s310, 8
        %s312 = scalar_lea.vmem [#allocation2], %s311
        // Predicated region
        $region29: #{tpu_custom_call.1} parent=27 // pred_check
          %p313 = pneg %p102
        $region30: #{tpu_custom_call.1} parent=27 // pred_check_branch
          %315 = sbr.rel (%p313) target = $region32
        $region31: #{tpu_custom_call.1} parent=27 // pred_region
          %317 = vsyncadd %s309, 0
          %s318 = sadd.s32 %s21, %s20
          %s319 = smul.addr %s318, 8
          %s320 = scalar_lea.hbm %s2, %s319
          %s322 = sshll.u32 %s312, 4
          %s323 = int_to_ptr.vmem [resolvable:$true] %s322
          %s324 = sshll.u32 %s320, 4
          %s325 = int_to_ptr.hbm [resolvable:$true] %s324
          %327 = dma.vmem_to_hbm [thread:$0]  %s323, 128, %s325, %s309
        $region32: #{tpu_custom_call.1} parent=27 // pred_fallthru
          _
      $region28: #{tpu_custom_call.1} parent=5 // pred_fallthru
        _
      %p328 = scmp.le.s32.totalorder 2, %s11
      // Predicated region
      $region33: #{tpu_custom_call.1} parent=5 // pred_check
        %p329 = pneg %p328
      $region34: #{tpu_custom_call.1} parent=5 // pred_check_branch
        %331 = sbr.rel (%p329) target = $region36
      $region35: #{tpu_custom_call.1} parent=5 // pred_region
        %s332 = ssub.s32 %s11, 2
        // Predicated region
        $region37: #{tpu_custom_call.1} parent=35 // pred_check
          %p333 = pneg %p108
        $region38: #{tpu_custom_call.1} parent=35 // pred_check_branch
          %335 = sbr.rel (%p333) target = $region40
        $region39: #{tpu_custom_call.1} parent=35 // pred_region
          %s336 = sand.u32 %s93, 1
          %s337 = scalar_lea.sflag [#allocation3], %s336
          %s338 = sand.u32 %s93, 1
          %s339 = smul.addr %s338, 8
          %s340 = scalar_lea.vmem [#allocation2], %s339
          %342 = dma.done %s337, 128
        $region40: #{tpu_custom_call.1} parent=35 // pred_fallthru
          _
      $region36: #{tpu_custom_call.1} parent=5 // pred_fallthru
        _
    $region6: #{tpu_custom_call.1} parent=1 // loop_footer
      %s15 = sadd.s32 1, %s11
    $region7: #{tpu_custom_call.1} parent=1 // loop_footer_branch
      %10 = sbr.rel target = $region3
    $region8: #{tpu_custom_call.1} parent=1 // loop_exit
      _
    %343 = vsyncpa [#allocation3], 1
    %s344 = scalar_lea.sflag [#allocation3], 1
    %345 = vsyncpa %s344, 1

</llo_original>
